<compile_context>
chip_gen: v7x
topology: tpu7x:2x2x1
jax: 0.10.0
libtpu: 0.0.40
codegen_flags: <defaults>
</compile_context>

<pallas_src>
import jax
import jax.numpy as jnp
from jax.experimental import pallas as pl
from jax.experimental.pallas import tpu as pltpu


def _round_up(x, m):
    return (x + m - 1) // m * m


def _pick_tile_rows(m_total, row_bytes, target_bytes=2 << 20, tm_max=2048):
    """Rows per tile: a divisor of m_total (no partial tail block), a multiple of
    the sublane granularity, sized to ~target_bytes of input per buffer, and
    capped at m_total//2 so the 'parallel' grid axis has >= 2 tiles (v7x)."""
    g = None
    for cand_g in (32, 16, 8):
        if m_total % cand_g == 0 and m_total > cand_g:
            g = cand_g
            break
    if g is None:
        return m_total                                  # single full-extent block
    target = (target_bytes // max(row_bytes, 1)) // g * g
    target = (min(tm_max, max(g, target), m_total // 2) // g) * g
    target = max(g, target)
    tm = g
    for cand in range(int(target), g - 1, -g):
        if m_total % cand == 0:
            tm = cand
            break
    return tm


# ----------------------------------------------------------------------------
# Kernel 1: fused BN(inference) + ReLU + 1x1 conv (tiled matmul over pixels)
# ----------------------------------------------------------------------------
def _bn_relu_conv1x1_kernel(x_ref, scale_ref, shift_ref, w_ref, o_ref):
    # x_ref: (TM, Cin)  scale/shift: (1, Cin)  w_ref: (Cin, Cout)  o_ref: (TM, Cout)
    y = jnp.maximum(x_ref[...] * scale_ref[...] + shift_ref[...], 0)
    o_ref[...] = jnp.dot(y, w_ref[...],
                         preferred_element_type=jnp.float32).astype(o_ref.dtype)


# ----------------------------------------------------------------------------
# Kernel 2: fused BN + ReLU + 1x1 conv + 2x2 max-pool epilogue (tap-major).
# x_ref holds the 4 taps of every 2x2 window as 4 contiguous (TM, Cin) slabs, so
# the pool is a running VPU max over per-tap matmul results — no stride-2
# sublane slicing, and the intermediate is only (TM, Cout) f32.
# ----------------------------------------------------------------------------
def _bn_relu_conv1x1_pool_kernel(x_ref, scale_ref, shift_ref, w_ref, o_ref):
    # x_ref: (4, TM, Cin)  o_ref: (TM, Cout)
    scale = scale_ref[...]
    shift = shift_ref[...]
    w = w_ref[...]

    def tap(t):
        y = jnp.maximum(x_ref[t] * scale + shift, 0)
        return jnp.dot(y, w, preferred_element_type=jnp.float32)

    acc = tap(0)
    acc = jnp.maximum(acc, tap(1))
    acc = jnp.maximum(acc, tap(2))
    acc = jnp.maximum(acc, tap(3))
    o_ref[...] = acc.astype(o_ref.dtype)


def _call_tiled(x_arr, scale2, shift2, w2d, *, pool, out_dtype):
    cin, cout = w2d.shape
    if pool:
        taps, m_out, _ = x_arr.shape
    else:
        taps = 1
        m_out, _ = x_arr.shape

    itemsize = x_arr.dtype.itemsize
    out_itemsize = jnp.dtype(out_dtype).itemsize
    tm = _pick_tile_rows(m_out, taps * cin * itemsize)
    num_tiles = m_out // tm

    if pool:
        kernel = _bn_relu_conv1x1_pool_kernel
        x_spec = pl.BlockSpec((taps, tm, cin), lambda i: (0, i, 0))
    else:
        kernel = _bn_relu_conv1x1_kernel
        x_spec = pl.BlockSpec((tm, cin), lambda i: (i, 0))

    # VMEM working set: double-buffered x/out tiles, single-buffered residents,
    # plus f32 temporaries inside the body (matmul acc + BN/ReLU slab).
    x_block_bytes = taps * tm * cin * itemsize
    out_block_bytes = tm * cout * out_itemsize
    w_bytes = cin * cout * w2d.dtype.itemsize
    est = (2 * x_block_bytes + 2 * out_block_bytes + w_bytes
           + 4 * cin * itemsize                       # scale + shift
           + 2 * tm * cout * 4 + tm * cin * 4)        # f32 temporaries
    vmem_limit = int(min(max(2 * est + (4 << 20), 16 << 20), 48 << 20))

    cost = pl.CostEstimate(
        flops=2 * taps * m_out * cin * cout,
        transcendentals=0,
        bytes_accessed=(x_arr.size * itemsize
                        + (cin * cout + 2 * cin) * w2d.dtype.itemsize
                        + m_out * cout * out_itemsize),
    )

    return pl.pallas_call(
        kernel,
        out_shape=jax.ShapeDtypeStruct((m_out, cout), out_dtype),
        grid_spec=pltpu.PrefetchScalarGridSpec(
            num_scalar_prefetch=0,
            grid=(num_tiles,),
            in_specs=[
                x_spec,
                # scale / shift / weight: whole-array, single-buffered VMEM residents.
                pl.BlockSpec(memory_space=pltpu.MemorySpace.VMEM),
                pl.BlockSpec(memory_space=pltpu.MemorySpace.VMEM),
                pl.BlockSpec(memory_space=pltpu.MemorySpace.VMEM),
            ],
            out_specs=pl.BlockSpec((tm, cout), lambda i: (i, 0)),
        ),
        compiler_params=pltpu.CompilerParams(
            dimension_semantics=("parallel",),   # v7x: shard M-tiles over both TCs
            vmem_limit_bytes=vmem_limit),
        cost_estimate=cost,
    )(x_arr, scale2, shift2, w2d)


# ----------------------------------------------------------------------------
# _Transition forward (layout glue in plain JAX, hot path in Pallas)
# ----------------------------------------------------------------------------
def transition_forward(x_nchw, params, pool=True,
                       compute_dtype=jnp.bfloat16, out_dtype=None):
    """x_nchw: (N, Cin, H, W) -> (N, Cout, H', W') matching PyTorch (inference BN).

    compute_dtype: MXU/DMA dtype for activations & weights (f32 accumulation).
    out_dtype: output activation dtype (default: same as the input activations).
    """
    gamma, beta, run_mean, run_var, w_oihw = params
    eps = 1e-5

    N, Cin, H, W = x_nchw.shape
    Cout = w_oihw.shape[0]
    dot_dtype = jnp.dtype(compute_dtype)
    out_dtype = jnp.dtype(out_dtype) if out_dtype is not None else x_nchw.dtype

    # Fold BatchNorm (inference) into per-channel scale/shift (computed in f32).
    scale = gamma.astype(jnp.float32) / jnp.sqrt(run_var.astype(jnp.float32) + eps)
    shift = beta.astype(jnp.float32) - run_mean.astype(jnp.float32) * scale

    # Pad channel dims to lane width (128) -> lane-dense loads/stores, MXU-friendly.
    # No-op when channels are already multiples of 128 (typical DSOD transitions).
    Cin_p, Cout_p = _round_up(Cin, 128), _round_up(Cout, 128)

    w2d = jnp.transpose(w_oihw.reshape(Cout, Cin), (1, 0))           # (Cin, Cout)
    if (Cin_p, Cout_p) != (Cin, Cout):
        w2d = jnp.pad(w2d, ((0, Cin_p - Cin), (0, Cout_p - Cout)))
        scale = jnp.pad(scale, (0, Cin_p - Cin))
        shift = jnp.pad(shift, (0, Cin_p - Cin))
    w2d = w2d.astype(dot_dtype)
    scale2 = scale.astype(dot_dtype).reshape(1, Cin_p)
    shift2 = shift.astype(dot_dtype).reshape(1, Cin_p)

    # Cast activations once (bf16 default): halves input DMA and x double-buffer.
    x = x_nchw.astype(dot_dtype)

    if pool:
        Ho, Wo = H // 2, W // 2
        # Floor behaviour of MaxPool2d(2,2): drop odd trailing row/col.  The conv
        # is 1x1 (pointwise) so cropping before the conv is equivalent.
        xc = x[:, :, : 2 * Ho, : 2 * Wo]
        # Tap-major layout: (dh, dw) leading, so each tap of every 2x2 window is a
        # contiguous (M_out, Cin) slab and the kernel's pool is pure VPU maxes.
        xg = xc.reshape(N, Cin, Ho, 2, Wo, 2)
        xg = jnp.transpose(xg, (3, 5, 0, 2, 4, 1))                   # (2,2,N,Ho,Wo,Cin)
        x3d = xg.reshape(4, N * Ho * Wo, Cin)
        if Cin_p != Cin:
            x3d = jnp.pad(x3d, ((0, 0), (0, 0), (0, Cin_p - Cin)))

        out2d = _call_tiled(x3d, scale2, shift2, w2d, pool=True,
                            out_dtype=out_dtype)[:, :Cout]
        out = out2d.reshape(N, Ho, Wo, Cout)
        return jnp.transpose(out, (0, 3, 1, 2))
    else:
        x2d = jnp.transpose(x, (0, 2, 3, 1)).reshape(N * H * W, Cin)
        if Cin_p != Cin:
            x2d = jnp.pad(x2d, ((0, 0), (0, Cin_p - Cin)))

        out2d = _call_tiled(x2d, scale2, shift2, w2d, pool=False,
                            out_dtype=out_dtype)[:, :Cout]
        out = out2d.reshape(N, H, W, Cout)
        return jnp.transpose(out, (0, 3, 1, 2))


def transition_reference(x_nchw, params, pool=True):
    """Pure-JAX reference for correctness checking."""
    gamma, beta, run_mean, run_var, w_oihw = params
    eps = 1e-5
    xn = (x_nchw - run_mean[None, :, None, None]) / jnp.sqrt(
        run_var[None, :, None, None] + eps)
    xn = xn * gamma[None, :, None, None] + beta[None, :, None, None]
    xn = jnp.maximum(xn, 0.0)
    out = jax.lax.conv_general_dilated(
        xn, w_oihw, window_strides=(1, 1), padding="VALID",
        dimension_numbers=("NCHW", "OIHW", "NCHW"))
    if pool:
        out = jax.lax.reduce_window(
            out, -jnp.inf, jax.lax.max,
            window_dimensions=(1, 1, 2, 2),
            window_strides=(1, 1, 2, 2), padding="VALID")
    return out


if __name__ == "__main__":
    key = jax.random.PRNGKey(0)
    k_x, k_g, k_b, k_m, k_v, k_w = jax.random.split(key, 6)

    N, Cin, H, W = 2, 4, 16, 16
    Cout = 8

    x = jax.random.normal(k_x, (N, Cin, H, W), dtype=jnp.float32)
    gamma = 1.0 + 0.1 * jax.random.normal(k_g, (Cin,), dtype=jnp.float32)
    beta = 0.1 * jax.random.normal(k_b, (Cin,), dtype=jnp.float32)
    run_mean = 0.1 * jax.random.normal(k_m, (Cin,), dtype=jnp.float32)
    run_var = 1.0 + 0.1 * jax.random.uniform(k_v, (Cin,), dtype=jnp.float32)
    w_oihw = 0.1 * jax.random.normal(k_w, (Cout, Cin, 1, 1), dtype=jnp.float32)
    params = (gamma, beta, run_mean, run_var, w_oihw)

    ref_pool = jax.block_until_ready(transition_reference(x, params, pool=True))
    ref_np = jax.block_until_ready(transition_reference(x, params, pool=False))

    # Exact f32 path -- tight check against the reference.
    out_pool_f32 = jax.block_until_ready(
        transition_forward(x, params, pool=True, compute_dtype=jnp.float32))
    assert out_pool_f32.shape == (N, Cout, H // 2, W // 2), out_pool_f32.shape
    assert jnp.allclose(out_pool_f32, ref_pool, atol=1e-5, rtol=1e-5), "pool f32 mismatch"

    out_np_f32 = jax.block_until_ready(
        transition_forward(x, params, pool=False, compute_dtype=jnp.float32))
    assert out_np_f32.shape == (N, Cout, H, W), out_np_f32.shape
    assert jnp.allclose(out_np_f32, ref_np, atol=1e-5, rtol=1e-5), "no-pool f32 mismatch"

    # Default bf16 matmul/DMA path (f32 accumulation) -- looser tolerance.
    out_pool = jax.block_until_ready(transition_forward(x, params, pool=True))
    assert out_pool.shape == (N, Cout, H // 2, W // 2), out_pool.shape
    assert jnp.allclose(out_pool, ref_pool, atol=3e-2, rtol=3e-2), "pool bf16 mismatch"

    out_np = jax.block_until_ready(transition_forward(x, params, pool=False))
    assert out_np.shape == (N, Cout, H, W), out_np.shape
    assert jnp.allclose(out_np, ref_np, atol=3e-2, rtol=3e-2), "no-pool bf16 mismatch"

    print("KERNEL_OK")
</pallas_src>

<mosaic_0001>
module attributes {stable_mosaic.version = 11 : i64} {
  func.func @_bn_relu_conv1x1_pool_kernel(%arg0: i32, %arg1: memref<4x64x128xf32, #tpu.memory_space<vmem>>, %arg2: memref<1x128xf32, #tpu.memory_space<vmem>>, %arg3: memref<1x128xf32, #tpu.memory_space<vmem>>, %arg4: memref<128x128xf32, #tpu.memory_space<vmem>>, %arg5: memref<64x128xf32, #tpu.memory_space<vmem>>) attributes {dimension_semantics = [#tpu.dimension_semantics<parallel>], iteration_bounds = array<i64: 2>, scalar_prefetch = 0 : i64, scratch_operands = 0 : i64, tpu.core_type = #tpu.core_type<tc>, window_params = [{transform_indices = @transform_0, window_bounds = array<i64: 4, 64, 128>}, {pipeline_mode = #tpu.pipeline_mode<synchronous>, transform_indices = @transform_1, window_bounds = array<i64: 1, 128>}, {pipeline_mode = #tpu.pipeline_mode<synchronous>, transform_indices = @transform_2, window_bounds = array<i64: 1, 128>}, {pipeline_mode = #tpu.pipeline_mode<synchronous>, transform_indices = @transform_3, window_bounds = array<i64: 128, 128>}, {transform_indices = @transform_4, window_bounds = array<i64: 64, 128>}]} {
    %c0 = arith.constant 0 : index
    %c0_0 = arith.constant 0 : index
    %0 = vector.load %arg2[%c0, %c0_0] : memref<1x128xf32, #tpu.memory_space<vmem>>, vector<1x128xf32>
    %c0_1 = arith.constant 0 : index
    %c0_2 = arith.constant 0 : index
    %1 = vector.load %arg3[%c0_1, %c0_2] : memref<1x128xf32, #tpu.memory_space<vmem>>, vector<1x128xf32>
    %c0_3 = arith.constant 0 : index
    %c0_4 = arith.constant 0 : index
    %2 = vector.load %arg4[%c0_3, %c0_4] : memref<128x128xf32, #tpu.memory_space<vmem>>, vector<128x128xf32>
    %c0_5 = arith.constant 0 : index
    %c0_6 = arith.constant 0 : index
    %c0_7 = arith.constant 0 : index
    %3 = vector.load %arg1[%c0_5, %c0_6, %c0_7] : memref<4x64x128xf32, #tpu.memory_space<vmem>>, vector<1x64x128xf32>
    %4 = vector.shape_cast %3 : vector<1x64x128xf32> to vector<64x128xf32>
    %5 = vector.broadcast %0 : vector<1x128xf32> to vector<64x128xf32>
    %6 = arith.mulf %4, %5 : vector<64x128xf32>
    %7 = vector.broadcast %1 : vector<1x128xf32> to vector<64x128xf32>
    %8 = arith.addf %6, %7 : vector<64x128xf32>
    %cst = arith.constant 0.000000e+00 : f32
    %9 = vector.broadcast %cst : f32 to vector<64x128xf32>
    %10 = arith.maximumf %8, %9 : vector<64x128xf32>
    %cst_8 = arith.constant dense<0.000000e+00> : vector<64x128xf32>
    %11 = tpu.matmul %10, %2, %cst_8 {dimension_numbers = #tpu.dot_dimension_numbers<[1], [0], [0], [1], [0, 0, 1, 1], [], []>} : vector<64x128xf32>, vector<128x128xf32>, vector<64x128xf32> -> vector<64x128xf32>
    %c1 = arith.constant 1 : index
    %c0_9 = arith.constant 0 : index
    %c0_10 = arith.constant 0 : index
    %12 = vector.load %arg1[%c1, %c0_9, %c0_10] : memref<4x64x128xf32, #tpu.memory_space<vmem>>, vector<1x64x128xf32>
    %13 = vector.shape_cast %12 : vector<1x64x128xf32> to vector<64x128xf32>
    %14 = vector.broadcast %0 : vector<1x128xf32> to vector<64x128xf32>
    %15 = arith.mulf %13, %14 : vector<64x128xf32>
    %16 = vector.broadcast %1 : vector<1x128xf32> to vector<64x128xf32>
    %17 = arith.addf %15, %16 : vector<64x128xf32>
    %cst_11 = arith.constant 0.000000e+00 : f32
    %18 = vector.broadcast %cst_11 : f32 to vector<64x128xf32>
    %19 = arith.maximumf %17, %18 : vector<64x128xf32>
    %cst_12 = arith.constant dense<0.000000e+00> : vector<64x128xf32>
    %20 = tpu.matmul %19, %2, %cst_12 {dimension_numbers = #tpu.dot_dimension_numbers<[1], [0], [0], [1], [0, 0, 1, 1], [], []>} : vector<64x128xf32>, vector<128x128xf32>, vector<64x128xf32> -> vector<64x128xf32>
    %21 = arith.maximumf %11, %20 : vector<64x128xf32>
    %c2 = arith.constant 2 : index
    %c0_13 = arith.constant 0 : index
    %c0_14 = arith.constant 0 : index
    %22 = vector.load %arg1[%c2, %c0_13, %c0_14] : memref<4x64x128xf32, #tpu.memory_space<vmem>>, vector<1x64x128xf32>
    %23 = vector.shape_cast %22 : vector<1x64x128xf32> to vector<64x128xf32>
    %24 = vector.broadcast %0 : vector<1x128xf32> to vector<64x128xf32>
    %25 = arith.mulf %23, %24 : vector<64x128xf32>
    %26 = vector.broadcast %1 : vector<1x128xf32> to vector<64x128xf32>
    %27 = arith.addf %25, %26 : vector<64x128xf32>
    %cst_15 = arith.constant 0.000000e+00 : f32
    %28 = vector.broadcast %cst_15 : f32 to vector<64x128xf32>
    %29 = arith.maximumf %27, %28 : vector<64x128xf32>
    %cst_16 = arith.constant dense<0.000000e+00> : vector<64x128xf32>
    %30 = tpu.matmul %29, %2, %cst_16 {dimension_numbers = #tpu.dot_dimension_numbers<[1], [0], [0], [1], [0, 0, 1, 1], [], []>} : vector<64x128xf32>, vector<128x128xf32>, vector<64x128xf32> -> vector<64x128xf32>
    %31 = arith.maximumf %21, %30 : vector<64x128xf32>
    %c3 = arith.constant 3 : index
    %c0_17 = arith.constant 0 : index
    %c0_18 = arith.constant 0 : index
    %32 = vector.load %arg1[%c3, %c0_17, %c0_18] : memref<4x64x128xf32, #tpu.memory_space<vmem>>, vector<1x64x128xf32>
    %33 = vector.shape_cast %32 : vector<1x64x128xf32> to vector<64x128xf32>
    %34 = vector.broadcast %0 : vector<1x128xf32> to vector<64x128xf32>
    %35 = arith.mulf %33, %34 : vector<64x128xf32>
    %36 = vector.broadcast %1 : vector<1x128xf32> to vector<64x128xf32>
    %37 = arith.addf %35, %36 : vector<64x128xf32>
    %cst_19 = arith.constant 0.000000e+00 : f32
    %38 = vector.broadcast %cst_19 : f32 to vector<64x128xf32>
    %39 = arith.maximumf %37, %38 : vector<64x128xf32>
    %cst_20 = arith.constant dense<0.000000e+00> : vector<64x128xf32>
    %40 = tpu.matmul %39, %2, %cst_20 {dimension_numbers = #tpu.dot_dimension_numbers<[1], [0], [0], [1], [0, 0, 1, 1], [], []>} : vector<64x128xf32>, vector<128x128xf32>, vector<64x128xf32> -> vector<64x128xf32>
    %41 = arith.maximumf %31, %40 : vector<64x128xf32>
    %c0_21 = arith.constant 0 : index
    %c0_22 = arith.constant 0 : index
    %42 = vector.load %arg5[%c0_21, %c0_22] : memref<64x128xf32, #tpu.memory_space<vmem>>, vector<64x128xf32>
    tpu.vector_store %arg5[%c0_21, %c0_22], %41 {strides = array<i32>} : memref<64x128xf32, #tpu.memory_space<vmem>>, vector<64x128xf32>,
    return
  }
  func.func @transform_0(%arg0: i32) -> (i32, i32, i32) {
    %c0_i32 = arith.constant 0 : i32
    %c0_i32_0 = arith.constant 0 : i32
    %c0_i32_1 = arith.constant 0 : i32
    return %c0_i32, %arg0, %c0_i32_0 : i32, i32, i32
  }
  func.func @transform_1(%arg0: i32) -> (i32, i32) {
    %c0_i32 = arith.constant 0 : i32
    %c0_i32_0 = arith.constant 0 : i32
    %c0_i32_1 = arith.constant 0 : i32
    return %c0_i32, %c0_i32_0 : i32, i32
  }
  func.func @transform_2(%arg0: i32) -> (i32, i32) {
    %c0_i32 = arith.constant 0 : i32
    %c0_i32_0 = arith.constant 0 : i32
    %c0_i32_1 = arith.constant 0 : i32
    return %c0_i32, %c0_i32_0 : i32, i32
  }
  func.func @transform_3(%arg0: i32) -> (i32, i32) {
    %c0_i32 = arith.constant 0 : i32
    %c0_i32_0 = arith.constant 0 : i32
    %c0_i32_1 = arith.constant 0 : i32
    return %c0_i32, %c0_i32_0 : i32, i32
  }
  func.func @transform_4(%arg0: i32) -> (i32, i32) {
    %c0_i32 = arith.constant 0 : i32
    %c0_i32_0 = arith.constant 0 : i32
    return %arg0, %c0_i32 : i32, i32
  }
}

</mosaic_0001>

<llo_original>
// kernel: tpu_custom_call.1
$region0: #{tpu_custom_call.1}
  #allocation0 [shape = 'u32[]', space=smem, size = 0x4, offset = 0x4, fixed_abs, tag = 'smem constant byte address 0x4 - core index']
  #allocation1 [shape = 'u32[144,128]{1,0:T(1,128)}', space=vmem, size = 0x12000, scoped, tag = 'internal scratch']
  #allocation8 [shape = 's32[]', space=sflag, size = 0x4, offset = 0, fixed_abs, tag = 'sflag constant byte address 0x0 - dummy sync flag']
  %s0 = inlined_call_operand.hbm [shape: f32[4,128,128], index: 0, kind: input, shape index: {}]
  %s1 = inlined_call_operand.vmem [shape: f32[1,128], index: 1, kind: input, shape index: {}]
  %s2 = inlined_call_operand.vmem [shape: f32[1,128], index: 2, kind: input, shape index: {}]
  %s3 = inlined_call_operand.hbm [shape: f32[128,128], index: 3, kind: input, shape index: {}]
  %s4 = inlined_call_operand.hbm [shape: f32[128,128], index: 4, kind: output, shape index: {}]
  %s5 = sld [smem:[#allocation0]]
  $region57: #{tpu_custom_call.1} parent=0
    _
  %s7 = ssub.s32 1, %s5
  %s8 = scalar_select 0, %s7, %s5
  $region1: #{tpu_custom_call.1} parent=0
    #allocation2 [shape = 'u8[262144]{0}', space=vmem, size = 0x40000, scoped, tag = 'input window, operand 0']
    #allocation3 [shape = 's32[2]{0}', space=sflag, size = 0x8, scoped, tag = 'scoped memory for tpu_custom_call.1']
    #allocation4 [shape = 's32[2]{0}', space=sflag, size = 0x8, scoped, tag = 'scoped memory for tpu_custom_call.1']
    #allocation5 [shape = 'u8[65536]{0}', space=vmem, size = 0x10000, scoped, tag = 'input window, operand 3, single buffered']
    #allocation6 [shape = 's32[1]{0}', space=sflag, size = 0x4, scoped, tag = 'scoped memory for tpu_custom_call.1']
    #allocation7 [shape = 'u8[65536]{0}', space=vmem, size = 0x10000, scoped, tag = 'output window, operand 0']
    %9 = vsyncpa [#allocation3], 0
    %s10 = scalar_lea.sflag [#allocation3], 1
    %11 = vsyncpa %s10, 0
    %12 = vsyncpa [#allocation6], 0
    %13 = vsyncpa [#allocation4], 0
    %s14 = scalar_lea.sflag [#allocation4], 1
    %15 = vsyncpa %s14, 0
    loop: start=0, step=1, limit=4
    $region2: #{tpu_custom_call.1} parent=1 // loop_pre_header
      _
    $region3: #{tpu_custom_call.1} parent=1 // loop_header
      %s17 = sphi 0, %s21
      %p18 = scmp.ge.s32.totalorder %s17, 4
      %s27 = sphi 0, %s29
      %s30 = sphi 0, %s27
      %s31 = sphi 0, %s30
      %s47 = sphi 0, %s31
      %s51 = sphi 0, %s51
      %s53 = sphi 0, %s51
      %s54 = sphi 0, %s53
      %s68 = sphi 0, %s54
      %s72 = sphi 0, %s72
      %s74 = sphi 0, %s72
      %s75 = sphi 0, %s74
      %s89 = sphi 0, %s75
      %s93 = sphi 0, %s93
      %s95 = sphi 0, %s93
      %s96 = sphi 0, %s95
      %s110 = sphi 0, %s96
      %s116 = sphi 0, %s118
      %s119 = sphi 0, %s116
      %s120 = sphi 0, %s119
      %s136 = sphi 0, %s120
    $region4: #{tpu_custom_call.1} parent=1 // loop_header_branch
      %20 = sbr.rel (%p18) target = $region8
    $region5: #{tpu_custom_call.1} parent=1 // loop_body
      %s22 = ssub.s32 %s17, 1
      %s23 = ssub.s32 %s17, 2
      %s24 = sadd.s32 %s17, 1
      %s25 = ssub.s32 %s17, %s24
      %p26 = scmp.eq.s32.totalorder %s25, 0
      %s28 = sadd.s32 %s27, 1
      %s29 = scalar_select %p26, %s27, %s28
      %p32 = pneg %p26
      %p33 = scmp.eq.s32.totalorder %s17, 1
      %p34 = por %p32, %p33
      %p35 = scmp.ne.s32.totalorder %s27, %s30
      %p36 = scmp.eq.s32.totalorder %s17, 0
      %p37 = por %p35, %p36
      %p38 = scmp.ne.s32.totalorder %s27, %s30
      %p39 = scmp.eq.s32.totalorder %s22, 1
      %p40 = por %p38, %p39
      %p41 = scmp.ne.s32.totalorder %s30, %s31
      %p42 = scmp.eq.s32.totalorder %s22, 0
      %p43 = por %p41, %p42
      %p44 = scmp.ne.s32.totalorder %s30, %s31
      %p45 = scmp.eq.s32.totalorder %s23, 1
      %p46 = por %p44, %p45
      %p48 = scmp.ne.s32.totalorder %s31, %s47
      %p49 = scmp.eq.s32.totalorder %s23, 0
      %p50 = por %p48, %p49
      %s52 = sadd.s32 %s51, 1
      %p55 = scmp.eq.s32.totalorder %s17, 1
      %p56 = scmp.ne.s32.totalorder %s51, %s53
      %p57 = scmp.eq.s32.totalorder %s17, 0
      %p58 = por %p56, %p57
      %p59 = scmp.ne.s32.totalorder %s51, %s53
      %p60 = scmp.eq.s32.totalorder %s22, 1
      %p61 = por %p59, %p60
      %p62 = scmp.ne.s32.totalorder %s53, %s54
      %p63 = scmp.eq.s32.totalorder %s22, 0
      %p64 = por %p62, %p63
      %p65 = scmp.ne.s32.totalorder %s53, %s54
      %p66 = scmp.eq.s32.totalorder %s23, 1
      %p67 = por %p65, %p66
      %p69 = scmp.ne.s32.totalorder %s54, %s68
      %p70 = scmp.eq.s32.totalorder %s23, 0
      %p71 = por %p69, %p70
      %s73 = sadd.s32 %s72, 1
      %p76 = scmp.eq.s32.totalorder %s17, 1
      %p77 = scmp.ne.s32.totalorder %s72, %s74
      %p78 = scmp.eq.s32.totalorder %s17, 0
      %p79 = por %p77, %p78
      %p80 = scmp.ne.s32.totalorder %s72, %s74
      %p81 = scmp.eq.s32.totalorder %s22, 1
      %p82 = por %p80, %p81
      %p83 = scmp.ne.s32.totalorder %s74, %s75
      %p84 = scmp.eq.s32.totalorder %s22, 0
      %p85 = por %p83, %p84
      %p86 = scmp.ne.s32.totalorder %s74, %s75
      %p87 = scmp.eq.s32.totalorder %s23, 1
      %p88 = por %p86, %p87
      %p90 = scmp.ne.s32.totalorder %s75, %s89
      %p91 = scmp.eq.s32.totalorder %s23, 0
      %p92 = por %p90, %p91
      %s94 = sadd.s32 %s93, 1
      %p97 = scmp.eq.s32.totalorder %s17, 1
      %p98 = scmp.ne.s32.totalorder %s93, %s95
      %p99 = scmp.eq.s32.totalorder %s17, 0
      %p100 = por %p98, %p99
      %p101 = scmp.ne.s32.totalorder %s93, %s95
      %p102 = scmp.eq.s32.totalorder %s22, 1
      %p103 = por %p101, %p102
      %p104 = scmp.ne.s32.totalorder %s95, %s96
      %p105 = scmp.eq.s32.totalorder %s22, 0
      %p106 = por %p104, %p105
      %p107 = scmp.ne.s32.totalorder %s95, %s96
      %p108 = scmp.eq.s32.totalorder %s23, 1
      %p109 = por %p107, %p108
      %p111 = scmp.ne.s32.totalorder %s96, %s110
      %p112 = scmp.eq.s32.totalorder %s23, 0
      %p113 = por %p111, %p112
      %s114 = ssub.s32 %s17, %s24
      %p115 = scmp.eq.s32.totalorder %s114, 0
      %s117 = sadd.s32 %s116, 1
      %s118 = scalar_select %p115, %s116, %s117
      %p121 = pneg %p115
      %p122 = scmp.eq.s32.totalorder %s17, 1
      %p123 = por %p121, %p122
      %p124 = scmp.ne.s32.totalorder %s116, %s119
      %p125 = scmp.eq.s32.totalorder %s17, 0
      %p126 = por %p124, %p125
      %p127 = scmp.ne.s32.totalorder %s116, %s119
      %p128 = scmp.eq.s32.totalorder %s22, 1
      %p129 = por %p127, %p128
      %p130 = scmp.ne.s32.totalorder %s119, %s120
      %p131 = scmp.eq.s32.totalorder %s22, 0
      %p132 = por %p130, %p131
      %p133 = scmp.ne.s32.totalorder %s119, %s120
      %p134 = scmp.eq.s32.totalorder %s23, 1
      %p135 = por %p133, %p134
      %p137 = scmp.ne.s32.totalorder %s120, %s136
      %p138 = scmp.eq.s32.totalorder %s23, 0
      %p139 = por %p137, %p138
      %p140 = scmp.le.s32.totalorder 1, %s17
      %p141 = scmp.lt.s32.totalorder %s17, 3
      %p142 = pnand %p140, %p141
      %p143 = pneg %p142
      // Predicated region
      $region9: #{tpu_custom_call.1} parent=5 // pred_check
        _
      $region10: #{tpu_custom_call.1} parent=5 // pred_check_branch
        %145 = sbr.rel (%p142) target = $region12
      $region11: #{tpu_custom_call.1} parent=5 // pred_region
        %s146 = ssub.s32 %s17, 1
        // Predicated region
        $region13: #{tpu_custom_call.1} parent=11 // pred_check
          %p147 = pneg %p64
        $region14: #{tpu_custom_call.1} parent=11 // pred_check_branch
          %149 = sbr.rel (%p147) target = $region16
        $region15: #{tpu_custom_call.1} parent=11 // pred_region
          _
        $region16: #{tpu_custom_call.1} parent=11 // pred_fallthru
          _
        // Predicated region
        $region17: #{tpu_custom_call.1} parent=11 // pred_check
          %p150 = pneg %p85
        $region18: #{tpu_custom_call.1} parent=11 // pred_check_branch
          %152 = sbr.rel (%p150) target = $region20
        $region19: #{tpu_custom_call.1} parent=11 // pred_region
          _
        $region20: #{tpu_custom_call.1} parent=11 // pred_fallthru
          _
        // Predicated region
        $region21: #{tpu_custom_call.1} parent=11 // pred_check
          %p153 = pneg %p106
        $region22: #{tpu_custom_call.1} parent=11 // pred_check_branch
          %155 = sbr.rel (%p153) target = $region24
        $region23: #{tpu_custom_call.1} parent=11 // pred_region
          %s157 = ssub.s32 2048, 2048
          %158 = vsyncadd [#allocation6], %s157
          %s159 = sshll.u32 [#allocation5], 4
          %s160 = int_to_ptr.vmem [resolvable:$true] %s159
          %165 = dma.hbm_to_vmem [thread:$0]  %s3, 2048, %s160, [#allocation6], 128, 128, 8
        $region24: #{tpu_custom_call.1} parent=11 // pred_fallthru
          _
      $region12: #{tpu_custom_call.1} parent=5 // pred_fallthru
        _
      %p166 = scmp.lt.s32.totalorder %s17, 2
      // Predicated region
      $region25: #{tpu_custom_call.1} parent=5 // pred_check
        %p167 = pneg %p166
      $region26: #{tpu_custom_call.1} parent=5 // pred_check_branch
        %169 = sbr.rel (%p167) target = $region28
      $region27: #{tpu_custom_call.1} parent=5 // pred_region
        // Predicated region
        $region29: #{tpu_custom_call.1} parent=27 // pred_check
          %p170 = pneg %p37
        $region30: #{tpu_custom_call.1} parent=27 // pred_check_branch
          %172 = sbr.rel (%p170) target = $region32
        $region31: #{tpu_custom_call.1} parent=27 // pred_region
          #allocation9 [shape = 'u32[6]{0}', space=smem, size = 0x18, scoped, tag = 'DMA stride descriptor']
          %s173 = sand.u32 %s27, 1
          %s174 = scalar_lea.sflag [#allocation3], %s173
          %s175 = sand.u32 %s27, 1
          %s176 = smul.addr %s175, 256
          %s177 = scalar_lea.vmem [#allocation2], %s176
          %s178 = smul.u32 8, %s17
          %s180 = ssub.s32 4096, 4096
          %181 = vsyncadd %s174, %s180
          %s182 = smul.addr %s178, 128
          %s183 = scalar_lea.hbm %s0, %s182
          %s185 = sshll.u32 1, 14
          %s186 = sxor.u32 4294967295, %s185
          %s188 = sld [smem:[#allocation0]]
          %s189 = sadd.s32 2, %s188
          %s191 = sshll.u32 7, 26
          %s192 = sxor.u32 4294967295, %s191
          %s193 = sand.u32 0, %s192
          %s194 = sshll.u32 %s189, 26
          %s195 = sor.u32 %s193, %s194
          %s196 = sshll.u32 %s177, 4
          %s197 = int_to_ptr.vmem [resolvable:$true] %s196
          %203 = sst [smem:[#allocation9]] 2048
          %s204 = scalar_lea.smem [#allocation9], 1
          %205 = sst [smem:[%s204]] 1024
          %s206 = scalar_lea.smem [#allocation9], 2
          %207 = sst [smem:[%s206]] 8
          %s208 = scalar_lea.smem [#allocation9], 3
          %209 = sst [smem:[%s208]] 128
          %s210 = scalar_lea.smem [#allocation9], 4
          %211 = sst [smem:[%s210]] 128
          %s212 = scalar_lea.smem [#allocation9], 5
          %213 = sst [smem:[%s212]] 8
          %215 = dma.general %s183, 4096, %s197, %s174, [#allocation8], [#allocation9], %s195, 0
        $region32: #{tpu_custom_call.1} parent=27 // pred_fallthru
          _
      $region28: #{tpu_custom_call.1} parent=5 // pred_fallthru
        _
      %p216 = scmp.le.s32.totalorder 1, %s17
      %p217 = scmp.lt.s32.totalorder %s17, 3
      %p218 = pnand %p216, %p217
      %p219 = pneg %p218
      // Predicated region
      $region33: #{tpu_custom_call.1} parent=5 // pred_check
        _
      $region34: #{tpu_custom_call.1} parent=5 // pred_check_branch
        %221 = sbr.rel (%p218) target = $region36
      $region35: #{tpu_custom_call.1} parent=5 // pred_region
        %s222 = ssub.s32 %s17, 1
        %s223 = sand.u32 %s30, 1
        %s224 = scalar_lea.sflag [#allocation3], %s223
        %s225 = sand.u32 %s30, 1
        %s226 = smul.addr %s225, 256
        %s227 = scalar_lea.vmem [#allocation2], %s226
        // Predicated region
        $region37: #{tpu_custom_call.1} parent=35 // pred_check
          %p228 = pneg %p43
        $region38: #{tpu_custom_call.1} parent=35 // pred_check_branch
          %230 = sbr.rel (%p228) target = $region40
        $region39: #{tpu_custom_call.1} parent=35 // pred_region
          %231 = dma.done %s224, 4096
        $region40: #{tpu_custom_call.1} parent=35 // pred_fallthru
          _
        // Predicated region
        $region41: #{tpu_custom_call.1} parent=35 // pred_check
          %p232 = pneg %p106
        $region42: #{tpu_custom_call.1} parent=35 // pred_check_branch
          %234 = sbr.rel (%p232) target = $region44
        $region43: #{tpu_custom_call.1} parent=35 // pred_region
          %235 = dma.done [#allocation6], 2048
        $region44: #{tpu_custom_call.1} parent=35 // pred_fallthru
          _
        %s236 = sand.u32 %s30, 1
        %s237 = scalar_lea.sflag [#allocation3], %s236
        %s238 = sand.u32 %s30, 1
        %s239 = smul.addr %s238, 256
        %s240 = scalar_lea.vmem [#allocation2], %s239
        %p241 = pneg %p43
        %p242 = pneg %p40
        %p243 = pneg %p64
        %p244 = pneg %p61
        %p245 = pneg %p85
        %p246 = pneg %p82
        %p247 = pneg %p106
        %p248 = pneg %p103
        %p249 = pneg %p132
        %p250 = pneg %p129
        %s251 = sand.u32 %s119, 1
        %s252 = scalar_lea.sflag [#allocation4], %s251
        %s253 = sand.u32 %s119, 1
        %s254 = smul.addr %s253, 64
        %s255 = scalar_lea.vmem [#allocation7], %s254
        %s256 = smul.u32 8, %s22
        %s257 = smul.u32 8, %s22
        %v258 = vld [vmem:[%s1] sm:$0x1]
        %v259 = vld [vmem:[%s2] sm:$0x1]
        %v260 = vld [vmem:[#allocation5] sm:$0xff]
        %v261 = vld [vmem:[#allocation5 + $0x8] sm:$0xff]
        %v262 = vld [vmem:[#allocation5 + $0x10] sm:$0xff]
        %v263 = vld [vmem:[#allocation5 + $0x18] sm:$0xff]
        %v264 = vld [vmem:[#allocation5 + $0x20] sm:$0xff]
        %v265 = vld [vmem:[#allocation5 + $0x28] sm:$0xff]
        %v266 = vld [vmem:[#allocation5 + $0x30] sm:$0xff]
        %v267 = vld [vmem:[#allocation5 + $0x38] sm:$0xff]
        %v268 = vld [vmem:[#allocation5 + $0x40] sm:$0xff]
        %v269 = vld [vmem:[#allocation5 + $0x48] sm:$0xff]
        %v270 = vld [vmem:[#allocation5 + $0x50] sm:$0xff]
        %v271 = vld [vmem:[#allocation5 + $0x58] sm:$0xff]
        %v272 = vld [vmem:[#allocation5 + $0x60] sm:$0xff]
        %v273 = vld [vmem:[#allocation5 + $0x68] sm:$0xff]
        %v274 = vld [vmem:[#allocation5 + $0x70] sm:$0xff]
        %v275 = vld [vmem:[#allocation5 + $0x78] sm:$0xff]
        %v276 = vld [vmem:[%s227] sm:$0xff]
        %v277 = vld [vmem:[%s227 + $0x8] sm:$0xff]
        %v278 = vld [vmem:[%s227 + $0x10] sm:$0xff]
        %v279 = vld [vmem:[%s227 + $0x18] sm:$0xff]
        %v280 = vld [vmem:[%s227 + $0x20] sm:$0xff]
        %v281 = vld [vmem:[%s227 + $0x28] sm:$0xff]
        %v282 = vld [vmem:[%s227 + $0x30] sm:$0xff]
        %v283 = vld [vmem:[%s227 + $0x38] sm:$0xff]
        %v285 = vlaneseq
        %v286 = vshrl.u32 %v285, 7
        %v287 = vsub.s32 0, %v286
        %v288 = vrot.slane %v258, %v287
        %v290 = vmul.f32 %v276, %v288
        %v291 = vmul.f32 %v277, %v288
        %v292 = vmul.f32 %v278, %v288
        %v293 = vmul.f32 %v279, %v288
        %v294 = vmul.f32 %v280, %v288
        %v295 = vmul.f32 %v281, %v288
        %v296 = vmul.f32 %v282, %v288
        %v297 = vmul.f32 %v283, %v288
        %v299 = vlaneseq
        %v300 = vshrl.u32 %v299, 7
        %v301 = vsub.s32 0, %v300
        %v302 = vrot.slane %v259, %v301
        %v304 = vadd.f32 %v290, %v302
        %v305 = vadd.f32 %v291, %v302
        %v306 = vadd.f32 %v292, %v302
        %v307 = vadd.f32 %v293, %v302
        %v308 = vadd.f32 %v294, %v302
        %v309 = vadd.f32 %v295, %v302
        %v310 = vadd.f32 %v296, %v302
        %v311 = vadd.f32 %v297, %v302
        %v312 = vmax.f32 %v304, 0.0
        %v313 = vmax.f32 %v305, 0.0
        %v314 = vmax.f32 %v306, 0.0
        %v315 = vmax.f32 %v307, 0.0
        %v316 = vmax.f32 %v308, 0.0
        %v317 = vmax.f32 %v309, 0.0
        %v318 = vmax.f32 %v310, 0.0
        %v319 = vmax.f32 %v311, 0.0
        %320 = vmatprep.subr.mxu0 0.0
        %321 = vmatpush1.msra.mxu0 %v260
        %322 = vmatprep.subr.mxu0 0.0
        %323 = vmatpush1.msra.mxu0 %v261
        %324 = vmatprep.subr.mxu0 0.0
        %325 = vmatpush1.msra.mxu0 %v262
        %326 = vmatprep.subr.mxu0 0.0
        %327 = vmatpush1.msra.mxu0 %v263
        %328 = vmatprep.subr.mxu0 0.0
        %329 = vmatpush1.msra.mxu0 %v264
        %330 = vmatprep.subr.mxu0 0.0
        %331 = vmatpush1.msra.mxu0 %v265
        %332 = vmatprep.subr.mxu0 0.0
        %333 = vmatpush1.msra.mxu0 %v266
        %334 = vmatprep.subr.mxu0 0.0
        %335 = vmatpush1.msra.mxu0 %v267
        %336 = vmatprep.subr.mxu0 0.0
        %337 = vmatpush1.msra.mxu0 %v268
        %338 = vmatprep.subr.mxu0 0.0
        %339 = vmatpush1.msra.mxu0 %v269
        %340 = vmatprep.subr.mxu0 0.0
        %341 = vmatpush1.msra.mxu0 %v270
        %342 = vmatprep.subr.mxu0 0.0
        %343 = vmatpush1.msra.mxu0 %v271
        %344 = vmatprep.subr.mxu0 0.0
        %345 = vmatpush1.msra.mxu0 %v272
        %346 = vmatprep.subr.mxu0 0.0
        %347 = vmatpush1.msra.mxu0 %v273
        %348 = vmatprep.subr.mxu0 0.0
        %349 = vmatpush1.msra.mxu0 %v274
        %350 = vmatprep.subr.mxu0 0.0
        %351 = vmatpush1.msra.mxu0 %v275
        %352 = vmatprep.subr.mxu0 0.0
        %353 = vmatpush1.msra.mxu0 0.0
        %354 = vmatprep.subr.mxu0 0.0
        %355 = vmatpush1.msra.mxu0 0.0
        %356 = vmatprep.subr.mxu0 0.0
        %357 = vmatpush1.msra.mxu0 0.0
        %358 = vmatprep.subr.mxu0 0.0
        %359 = vmatpush1.msra.mxu0 0.0
        %360 = vmatprep.subr.mxu0 0.0
        %361 = vmatpush1.msra.mxu0 0.0
        %362 = vmatprep.subr.mxu0 0.0
        %363 = vmatpush1.msra.mxu0 0.0
        %364 = vmatprep.subr.mxu0 0.0
        %365 = vmatpush1.msra.mxu0 0.0
        %366 = vmatprep.subr.mxu0 0.0
        %367 = vmatpush1.msra.mxu0 0.0
        %368 = vmatprep.subr.mxu0 0.0
        %369 = vmatpush1.msra.mxu0 0.0
        %370 = vmatprep.subr.mxu0 0.0
        %371 = vmatpush1.msra.mxu0 0.0
        %372 = vmatprep.subr.mxu0 0.0
        %373 = vmatpush1.msra.mxu0 0.0
        %374 = vmatprep.subr.mxu0 0.0
        %375 = vmatpush1.msra.mxu0 0.0
        %376 = vmatprep.subr.mxu0 0.0
        %377 = vmatpush1.msra.mxu0 0.0
        %378 = vmatprep.subr.mxu0 0.0
        %379 = vmatpush1.msra.mxu0 0.0
        %380 = vmatprep.subr.mxu0 0.0
        %381 = vmatpush1.msra.mxu0 0.0
        %382 = vmatprep.subr.mxu0 0.0
        %383 = vmatpush1.msra.mxu0 0.0
        %384 = vmatprep.mubr.f32.mxu0 0.0
        %385 = vmatmul.mubr.f32.gmra.mrb[0].mxu0 %v312
        %v386 = vpop.f32.mrb[0].mxu0
        %v387 = vadd.f32 0.0, %v386
        %v388 = vpop.f32.mrb[0].mxu0
        %389 = vmatprep.mubr.f32.mxu0 0.0
        %390 = vmatmul.mubr.f32.gmra.mrb[0].mxu0 %v313
        %v391 = vpop.f32.mrb[0].mxu0
        %v392 = vadd.f32 0.0, %v391
        %v393 = vpop.f32.mrb[0].mxu0
        %394 = vmatprep.mubr.f32.mxu0 0.0
        %395 = vmatmul.mubr.f32.gmra.mrb[0].mxu0 %v314
        %v396 = vpop.f32.mrb[0].mxu0
        %v397 = vadd.f32 0.0, %v396
        %v398 = vpop.f32.mrb[0].mxu0
        %399 = vmatprep.mubr.f32.mxu0 0.0
        %400 = vmatmul.mubr.f32.gmra.mrb[0].mxu0 %v315
        %v401 = vpop.f32.mrb[0].mxu0
        %v402 = vadd.f32 0.0, %v401
        %v403 = vpop.f32.mrb[0].mxu0
        %404 = vmatprep.mubr.f32.mxu0 0.0
        %405 = vmatmul.mubr.f32.gmra.mrb[0].mxu0 %v316
        %v406 = vpop.f32.mrb[0].mxu0
        %v407 = vadd.f32 0.0, %v406
        %v408 = vpop.f32.mrb[0].mxu0
        %409 = vmatprep.mubr.f32.mxu0 0.0
        %410 = vmatmul.mubr.f32.gmra.mrb[0].mxu0 %v317
        %v411 = vpop.f32.mrb[0].mxu0
        %v412 = vadd.f32 0.0, %v411
        %v413 = vpop.f32.mrb[0].mxu0
        %414 = vmatprep.mubr.f32.mxu0 0.0
        %415 = vmatmul.mubr.f32.gmra.mrb[0].mxu0 %v318
        %v416 = vpop.f32.mrb[0].mxu0
        %v417 = vadd.f32 0.0, %v416
        %v418 = vpop.f32.mrb[0].mxu0
        %419 = vmatprep.mubr.f32.mxu0 0.0
        %420 = vmatmul.mubr.f32.gmra.mrb[0].mxu0 %v319
        %v421 = vpop.f32.mrb[0].mxu0
        %v422 = vadd.f32 0.0, %v421
        %v423 = vpop.f32.mrb[0].mxu0
        %424 = vdwg.mxu0
        %s425 = scalar_lea.vmem %s227, 64 [#allocation2]
        %v426 = vld [vmem:[%s425] sm:$0xff]
        %v427 = vld [vmem:[%s425 + $0x8] sm:$0xff]
        %v428 = vld [vmem:[%s425 + $0x10] sm:$0xff]
        %v429 = vld [vmem:[%s425 + $0x18] sm:$0xff]
        %v430 = vld [vmem:[%s425 + $0x20] sm:$0xff]
        %v431 = vld [vmem:[%s425 + $0x28] sm:$0xff]
        %v432 = vld [vmem:[%s425 + $0x30] sm:$0xff]
        %v433 = vld [vmem:[%s425 + $0x38] sm:$0xff]
        %v434 = vmul.f32 %v426, %v288
        %v435 = vmul.f32 %v427, %v288
        %v436 = vmul.f32 %v428, %v288
        %v437 = vmul.f32 %v429, %v288
        %v438 = vmul.f32 %v430, %v288
        %v439 = vmul.f32 %v431, %v288
        %v440 = vmul.f32 %v432, %v288
        %v441 = vmul.f32 %v433, %v288
        %v442 = vadd.f32 %v434, %v302
        %v443 = vadd.f32 %v435, %v302
        %v444 = vadd.f32 %v436, %v302
        %v445 = vadd.f32 %v437, %v302
        %v446 = vadd.f32 %v438, %v302
        %v447 = vadd.f32 %v439, %v302
        %v448 = vadd.f32 %v440, %v302
        %v449 = vadd.f32 %v441, %v302
        %v450 = vmax.f32 %v442, 0.0
        %v451 = vmax.f32 %v443, 0.0
        %v452 = vmax.f32 %v444, 0.0
        %v453 = vmax.f32 %v445, 0.0
        %v454 = vmax.f32 %v446, 0.0
        %v455 = vmax.f32 %v447, 0.0
        %v456 = vmax.f32 %v448, 0.0
        %v457 = vmax.f32 %v449, 0.0
        %458 = vmatprep.subr.mxu0 0.0
        %459 = vmatpush1.msra.mxu0 %v260
        %460 = vmatprep.subr.mxu0 0.0
        %461 = vmatpush1.msra.mxu0 %v261
        %462 = vmatprep.subr.mxu0 0.0
        %463 = vmatpush1.msra.mxu0 %v262
        %464 = vmatprep.subr.mxu0 0.0
        %465 = vmatpush1.msra.mxu0 %v263
        %466 = vmatprep.subr.mxu0 0.0
        %467 = vmatpush1.msra.mxu0 %v264
        %468 = vmatprep.subr.mxu0 0.0
        %469 = vmatpush1.msra.mxu0 %v265
        %470 = vmatprep.subr.mxu0 0.0
        %471 = vmatpush1.msra.mxu0 %v266
        %472 = vmatprep.subr.mxu0 0.0
        %473 = vmatpush1.msra.mxu0 %v267
        %474 = vmatprep.subr.mxu0 0.0
        %475 = vmatpush1.msra.mxu0 %v268
        %476 = vmatprep.subr.mxu0 0.0
        %477 = vmatpush1.msra.mxu0 %v269
        %478 = vmatprep.subr.mxu0 0.0
        %479 = vmatpush1.msra.mxu0 %v270
        %480 = vmatprep.subr.mxu0 0.0
        %481 = vmatpush1.msra.mxu0 %v271
        %482 = vmatprep.subr.mxu0 0.0
        %483 = vmatpush1.msra.mxu0 %v272
        %484 = vmatprep.subr.mxu0 0.0
        %485 = vmatpush1.msra.mxu0 %v273
        %486 = vmatprep.subr.mxu0 0.0
        %487 = vmatpush1.msra.mxu0 %v274
        %488 = vmatprep.subr.mxu0 0.0
        %489 = vmatpush1.msra.mxu0 %v275
        %490 = vmatprep.subr.mxu0 0.0
        %491 = vmatpush1.msra.mxu0 0.0
        %492 = vmatprep.subr.mxu0 0.0
        %493 = vmatpush1.msra.mxu0 0.0
        %494 = vmatprep.subr.mxu0 0.0
        %495 = vmatpush1.msra.mxu0 0.0
        %496 = vmatprep.subr.mxu0 0.0
        %497 = vmatpush1.msra.mxu0 0.0
        %498 = vmatprep.subr.mxu0 0.0
        %499 = vmatpush1.msra.mxu0 0.0
        %500 = vmatprep.subr.mxu0 0.0
        %501 = vmatpush1.msra.mxu0 0.0
        %502 = vmatprep.subr.mxu0 0.0
        %503 = vmatpush1.msra.mxu0 0.0
        %504 = vmatprep.subr.mxu0 0.0
        %505 = vmatpush1.msra.mxu0 0.0
        %506 = vmatprep.subr.mxu0 0.0
        %507 = vmatpush1.msra.mxu0 0.0
        %508 = vmatprep.subr.mxu0 0.0
        %509 = vmatpush1.msra.mxu0 0.0
        %510 = vmatprep.subr.mxu0 0.0
        %511 = vmatpush1.msra.mxu0 0.0
        %512 = vmatprep.subr.mxu0 0.0
        %513 = vmatpush1.msra.mxu0 0.0
        %514 = vmatprep.subr.mxu0 0.0
        %515 = vmatpush1.msra.mxu0 0.0
        %516 = vmatprep.subr.mxu0 0.0
        %517 = vmatpush1.msra.mxu0 0.0
        %518 = vmatprep.subr.mxu0 0.0
        %519 = vmatpush1.msra.mxu0 0.0
        %520 = vmatprep.subr.mxu0 0.0
        %521 = vmatpush1.msra.mxu0 0.0
        %522 = vmatprep.mubr.f32.mxu0 0.0
        %523 = vmatmul.mubr.f32.gmra.mrb[0].mxu0 %v450
        %v524 = vpop.f32.mrb[0].mxu0
        %v525 = vadd.f32 0.0, %v524
        %v526 = vpop.f32.mrb[0].mxu0
        %527 = vmatprep.mubr.f32.mxu0 0.0
        %528 = vmatmul.mubr.f32.gmra.mrb[0].mxu0 %v451
        %v529 = vpop.f32.mrb[0].mxu0
        %v530 = vadd.f32 0.0, %v529
        %v531 = vpop.f32.mrb[0].mxu0
        %532 = vmatprep.mubr.f32.mxu0 0.0
        %533 = vmatmul.mubr.f32.gmra.mrb[0].mxu0 %v452
        %v534 = vpop.f32.mrb[0].mxu0
        %v535 = vadd.f32 0.0, %v534
        %v536 = vpop.f32.mrb[0].mxu0
        %537 = vmatprep.mubr.f32.mxu0 0.0
        %538 = vmatmul.mubr.f32.gmra.mrb[0].mxu0 %v453
        %v539 = vpop.f32.mrb[0].mxu0
        %v540 = vadd.f32 0.0, %v539
        %v541 = vpop.f32.mrb[0].mxu0
        %542 = vmatprep.mubr.f32.mxu0 0.0
        %543 = vmatmul.mubr.f32.gmra.mrb[0].mxu0 %v454
        %v544 = vpop.f32.mrb[0].mxu0
        %v545 = vadd.f32 0.0, %v544
        %v546 = vpop.f32.mrb[0].mxu0
        %547 = vmatprep.mubr.f32.mxu0 0.0
        %548 = vmatmul.mubr.f32.gmra.mrb[0].mxu0 %v455
        %v549 = vpop.f32.mrb[0].mxu0
        %v550 = vadd.f32 0.0, %v549
        %v551 = vpop.f32.mrb[0].mxu0
        %552 = vmatprep.mubr.f32.mxu0 0.0
        %553 = vmatmul.mubr.f32.gmra.mrb[0].mxu0 %v456
        %v554 = vpop.f32.mrb[0].mxu0
        %v555 = vadd.f32 0.0, %v554
        %v556 = vpop.f32.mrb[0].mxu0
        %557 = vmatprep.mubr.f32.mxu0 0.0
        %558 = vmatmul.mubr.f32.gmra.mrb[0].mxu0 %v457
        %v559 = vpop.f32.mrb[0].mxu0
        %v560 = vadd.f32 0.0, %v559
        %v561 = vpop.f32.mrb[0].mxu0
        %562 = vdwg.mxu0
        %v563 = vmax.f32 %v387, %v525
        %v564 = vmax.f32 %v392, %v530
        %v565 = vmax.f32 %v397, %v535
        %v566 = vmax.f32 %v402, %v540
        %v567 = vmax.f32 %v407, %v545
        %v568 = vmax.f32 %v412, %v550
        %v569 = vmax.f32 %v417, %v555
        %v570 = vmax.f32 %v422, %v560
        %s571 = scalar_lea.vmem %s227, 128 [#allocation2]
        %v572 = vld [vmem:[%s571] sm:$0xff]
        %v573 = vld [vmem:[%s571 + $0x8] sm:$0xff]
        %v574 = vld [vmem:[%s571 + $0x10] sm:$0xff]
        %v575 = vld [vmem:[%s571 + $0x18] sm:$0xff]
        %v576 = vld [vmem:[%s571 + $0x20] sm:$0xff]
        %v577 = vld [vmem:[%s571 + $0x28] sm:$0xff]
        %v578 = vld [vmem:[%s571 + $0x30] sm:$0xff]
        %v579 = vld [vmem:[%s571 + $0x38] sm:$0xff]
        %v580 = vmul.f32 %v572, %v288
        %v581 = vmul.f32 %v573, %v288
        %v582 = vmul.f32 %v574, %v288
        %v583 = vmul.f32 %v575, %v288
        %v584 = vmul.f32 %v576, %v288
        %v585 = vmul.f32 %v577, %v288
        %v586 = vmul.f32 %v578, %v288
        %v587 = vmul.f32 %v579, %v288
        %v588 = vadd.f32 %v580, %v302
        %v589 = vadd.f32 %v581, %v302
        %v590 = vadd.f32 %v582, %v302
        %v591 = vadd.f32 %v583, %v302
        %v592 = vadd.f32 %v584, %v302
        %v593 = vadd.f32 %v585, %v302
        %v594 = vadd.f32 %v586, %v302
        %v595 = vadd.f32 %v587, %v302
        %v596 = vmax.f32 %v588, 0.0
        %v597 = vmax.f32 %v589, 0.0
        %v598 = vmax.f32 %v590, 0.0
        %v599 = vmax.f32 %v591, 0.0
        %v600 = vmax.f32 %v592, 0.0
        %v601 = vmax.f32 %v593, 0.0
        %v602 = vmax.f32 %v594, 0.0
        %v603 = vmax.f32 %v595, 0.0
        %604 = vmatprep.subr.mxu0 0.0
        %605 = vmatpush1.msra.mxu0 %v260
        %606 = vmatprep.subr.mxu0 0.0
        %607 = vmatpush1.msra.mxu0 %v261
        %608 = vmatprep.subr.mxu0 0.0
        %609 = vmatpush1.msra.mxu0 %v262
        %610 = vmatprep.subr.mxu0 0.0
        %611 = vmatpush1.msra.mxu0 %v263
        %612 = vmatprep.subr.mxu0 0.0
        %613 = vmatpush1.msra.mxu0 %v264
        %614 = vmatprep.subr.mxu0 0.0
        %615 = vmatpush1.msra.mxu0 %v265
        %616 = vmatprep.subr.mxu0 0.0
        %617 = vmatpush1.msra.mxu0 %v266
        %618 = vmatprep.subr.mxu0 0.0
        %619 = vmatpush1.msra.mxu0 %v267
        %620 = vmatprep.subr.mxu0 0.0
        %621 = vmatpush1.msra.mxu0 %v268
        %622 = vmatprep.subr.mxu0 0.0
        %623 = vmatpush1.msra.mxu0 %v269
        %624 = vmatprep.subr.mxu0 0.0
        %625 = vmatpush1.msra.mxu0 %v270
        %626 = vmatprep.subr.mxu0 0.0
        %627 = vmatpush1.msra.mxu0 %v271
        %628 = vmatprep.subr.mxu0 0.0
        %629 = vmatpush1.msra.mxu0 %v272
        %630 = vmatprep.subr.mxu0 0.0
        %631 = vmatpush1.msra.mxu0 %v273
        %632 = vmatprep.subr.mxu0 0.0
        %633 = vmatpush1.msra.mxu0 %v274
        %634 = vmatprep.subr.mxu0 0.0
        %635 = vmatpush1.msra.mxu0 %v275
        %636 = vmatprep.subr.mxu0 0.0
        %637 = vmatpush1.msra.mxu0 0.0
        %638 = vmatprep.subr.mxu0 0.0
        %639 = vmatpush1.msra.mxu0 0.0
        %640 = vmatprep.subr.mxu0 0.0
        %641 = vmatpush1.msra.mxu0 0.0
        %642 = vmatprep.subr.mxu0 0.0
        %643 = vmatpush1.msra.mxu0 0.0
        %644 = vmatprep.subr.mxu0 0.0
        %645 = vmatpush1.msra.mxu0 0.0
        %646 = vmatprep.subr.mxu0 0.0
        %647 = vmatpush1.msra.mxu0 0.0
        %648 = vmatprep.subr.mxu0 0.0
        %649 = vmatpush1.msra.mxu0 0.0
        %650 = vmatprep.subr.mxu0 0.0
        %651 = vmatpush1.msra.mxu0 0.0
        %652 = vmatprep.subr.mxu0 0.0
        %653 = vmatpush1.msra.mxu0 0.0
        %654 = vmatprep.subr.mxu0 0.0
        %655 = vmatpush1.msra.mxu0 0.0
        %656 = vmatprep.subr.mxu0 0.0
        %657 = vmatpush1.msra.mxu0 0.0
        %658 = vmatprep.subr.mxu0 0.0
        %659 = vmatpush1.msra.mxu0 0.0
        %660 = vmatprep.subr.mxu0 0.0
        %661 = vmatpush1.msra.mxu0 0.0
        %662 = vmatprep.subr.mxu0 0.0
        %663 = vmatpush1.msra.mxu0 0.0
        %664 = vmatprep.subr.mxu0 0.0
        %665 = vmatpush1.msra.mxu0 0.0
        %666 = vmatprep.subr.mxu0 0.0
        %667 = vmatpush1.msra.mxu0 0.0
        %668 = vmatprep.mubr.f32.mxu0 0.0
        %669 = vmatmul.mubr.f32.gmra.mrb[0].mxu0 %v596
        %v670 = vpop.f32.mrb[0].mxu0
        %v671 = vadd.f32 0.0, %v670
        %v672 = vpop.f32.mrb[0].mxu0
        %673 = vmatprep.mubr.f32.mxu0 0.0
        %674 = vmatmul.mubr.f32.gmra.mrb[0].mxu0 %v597
        %v675 = vpop.f32.mrb[0].mxu0
        %v676 = vadd.f32 0.0, %v675
        %v677 = vpop.f32.mrb[0].mxu0
        %678 = vmatprep.mubr.f32.mxu0 0.0
        %679 = vmatmul.mubr.f32.gmra.mrb[0].mxu0 %v598
        %v680 = vpop.f32.mrb[0].mxu0
        %v681 = vadd.f32 0.0, %v680
        %v682 = vpop.f32.mrb[0].mxu0
        %683 = vmatprep.mubr.f32.mxu0 0.0
        %684 = vmatmul.mubr.f32.gmra.mrb[0].mxu0 %v599
        %v685 = vpop.f32.mrb[0].mxu0
        %v686 = vadd.f32 0.0, %v685
        %v687 = vpop.f32.mrb[0].mxu0
        %688 = vmatprep.mubr.f32.mxu0 0.0
        %689 = vmatmul.mubr.f32.gmra.mrb[0].mxu0 %v600
        %v690 = vpop.f32.mrb[0].mxu0
        %v691 = vadd.f32 0.0, %v690
        %v692 = vpop.f32.mrb[0].mxu0
        %693 = vmatprep.mubr.f32.mxu0 0.0
        %694 = vmatmul.mubr.f32.gmra.mrb[0].mxu0 %v601
        %v695 = vpop.f32.mrb[0].mxu0
        %v696 = vadd.f32 0.0, %v695
        %v697 = vpop.f32.mrb[0].mxu0
        %698 = vmatprep.mubr.f32.mxu0 0.0
        %699 = vmatmul.mubr.f32.gmra.mrb[0].mxu0 %v602
        %v700 = vpop.f32.mrb[0].mxu0
        %v701 = vadd.f32 0.0, %v700
        %v702 = vpop.f32.mrb[0].mxu0
        %703 = vmatprep.mubr.f32.mxu0 0.0
        %704 = vmatmul.mubr.f32.gmra.mrb[0].mxu0 %v603
        %v705 = vpop.f32.mrb[0].mxu0
        %v706 = vadd.f32 0.0, %v705
        %v707 = vpop.f32.mrb[0].mxu0
        %708 = vdwg.mxu0
        %v709 = vmax.f32 %v563, %v671
        %v710 = vmax.f32 %v564, %v676
        %v711 = vmax.f32 %v565, %v681
        %v712 = vmax.f32 %v566, %v686
        %v713 = vmax.f32 %v567, %v691
        %v714 = vmax.f32 %v568, %v696
        %v715 = vmax.f32 %v569, %v701
        %v716 = vmax.f32 %v570, %v706
        %s717 = scalar_lea.vmem %s227, 192 [#allocation2]
        %v718 = vld [vmem:[%s717] sm:$0xff]
        %v719 = vld [vmem:[%s717 + $0x8] sm:$0xff]
        %v720 = vld [vmem:[%s717 + $0x10] sm:$0xff]
        %v721 = vld [vmem:[%s717 + $0x18] sm:$0xff]
        %v722 = vld [vmem:[%s717 + $0x20] sm:$0xff]
        %v723 = vld [vmem:[%s717 + $0x28] sm:$0xff]
        %v724 = vld [vmem:[%s717 + $0x30] sm:$0xff]
        %v725 = vld [vmem:[%s717 + $0x38] sm:$0xff]
        %v726 = vmul.f32 %v718, %v288
        %v727 = vmul.f32 %v719, %v288
        %v728 = vmul.f32 %v720, %v288
        %v729 = vmul.f32 %v721, %v288
        %v730 = vmul.f32 %v722, %v288
        %v731 = vmul.f32 %v723, %v288
        %v732 = vmul.f32 %v724, %v288
        %v733 = vmul.f32 %v725, %v288
        %v734 = vadd.f32 %v726, %v302
        %v735 = vadd.f32 %v727, %v302
        %v736 = vadd.f32 %v728, %v302
        %v737 = vadd.f32 %v729, %v302
        %v738 = vadd.f32 %v730, %v302
        %v739 = vadd.f32 %v731, %v302
        %v740 = vadd.f32 %v732, %v302
        %v741 = vadd.f32 %v733, %v302
        %v742 = vmax.f32 %v734, 0.0
        %v743 = vmax.f32 %v735, 0.0
        %v744 = vmax.f32 %v736, 0.0
        %v745 = vmax.f32 %v737, 0.0
        %v746 = vmax.f32 %v738, 0.0
        %v747 = vmax.f32 %v739, 0.0
        %v748 = vmax.f32 %v740, 0.0
        %v749 = vmax.f32 %v741, 0.0
        %750 = vmatprep.subr.mxu0 0.0
        %751 = vmatpush1.msra.mxu0 %v260
        %752 = vmatprep.subr.mxu0 0.0
        %753 = vmatpush1.msra.mxu0 %v261
        %754 = vmatprep.subr.mxu0 0.0
        %755 = vmatpush1.msra.mxu0 %v262
        %756 = vmatprep.subr.mxu0 0.0
        %757 = vmatpush1.msra.mxu0 %v263
        %758 = vmatprep.subr.mxu0 0.0
        %759 = vmatpush1.msra.mxu0 %v264
        %760 = vmatprep.subr.mxu0 0.0
        %761 = vmatpush1.msra.mxu0 %v265
        %762 = vmatprep.subr.mxu0 0.0
        %763 = vmatpush1.msra.mxu0 %v266
        %764 = vmatprep.subr.mxu0 0.0
        %765 = vmatpush1.msra.mxu0 %v267
        %766 = vmatprep.subr.mxu0 0.0
        %767 = vmatpush1.msra.mxu0 %v268
        %768 = vmatprep.subr.mxu0 0.0
        %769 = vmatpush1.msra.mxu0 %v269
        %770 = vmatprep.subr.mxu0 0.0
        %771 = vmatpush1.msra.mxu0 %v270
        %772 = vmatprep.subr.mxu0 0.0
        %773 = vmatpush1.msra.mxu0 %v271
        %774 = vmatprep.subr.mxu0 0.0
        %775 = vmatpush1.msra.mxu0 %v272
        %776 = vmatprep.subr.mxu0 0.0
        %777 = vmatpush1.msra.mxu0 %v273
        %778 = vmatprep.subr.mxu0 0.0
        %779 = vmatpush1.msra.mxu0 %v274
        %780 = vmatprep.subr.mxu0 0.0
        %781 = vmatpush1.msra.mxu0 %v275
        %782 = vmatprep.subr.mxu0 0.0
        %783 = vmatpush1.msra.mxu0 0.0
        %784 = vmatprep.subr.mxu0 0.0
        %785 = vmatpush1.msra.mxu0 0.0
        %786 = vmatprep.subr.mxu0 0.0
        %787 = vmatpush1.msra.mxu0 0.0
        %788 = vmatprep.subr.mxu0 0.0
        %789 = vmatpush1.msra.mxu0 0.0
        %790 = vmatprep.subr.mxu0 0.0
        %791 = vmatpush1.msra.mxu0 0.0
        %792 = vmatprep.subr.mxu0 0.0
        %793 = vmatpush1.msra.mxu0 0.0
        %794 = vmatprep.subr.mxu0 0.0
        %795 = vmatpush1.msra.mxu0 0.0
        %796 = vmatprep.subr.mxu0 0.0
        %797 = vmatpush1.msra.mxu0 0.0
        %798 = vmatprep.subr.mxu0 0.0
        %799 = vmatpush1.msra.mxu0 0.0
        %800 = vmatprep.subr.mxu0 0.0
        %801 = vmatpush1.msra.mxu0 0.0
        %802 = vmatprep.subr.mxu0 0.0
        %803 = vmatpush1.msra.mxu0 0.0
        %804 = vmatprep.subr.mxu0 0.0
        %805 = vmatpush1.msra.mxu0 0.0
        %806 = vmatprep.subr.mxu0 0.0
        %807 = vmatpush1.msra.mxu0 0.0
        %808 = vmatprep.subr.mxu0 0.0
        %809 = vmatpush1.msra.mxu0 0.0
        %810 = vmatprep.subr.mxu0 0.0
        %811 = vmatpush1.msra.mxu0 0.0
        %812 = vmatprep.subr.mxu0 0.0
        %813 = vmatpush1.msra.mxu0 0.0
        %814 = vmatprep.mubr.f32.mxu0 0.0
        %815 = vmatmul.mubr.f32.gmra.mrb[0].mxu0 %v742
        %v816 = vpop.f32.mrb[0].mxu0
        %v817 = vadd.f32 0.0, %v816
        %v818 = vpop.f32.mrb[0].mxu0
        %819 = vmatprep.mubr.f32.mxu0 0.0
        %820 = vmatmul.mubr.f32.gmra.mrb[0].mxu0 %v743
        %v821 = vpop.f32.mrb[0].mxu0
        %v822 = vadd.f32 0.0, %v821
        %v823 = vpop.f32.mrb[0].mxu0
        %824 = vmatprep.mubr.f32.mxu0 0.0
        %825 = vmatmul.mubr.f32.gmra.mrb[0].mxu0 %v744
        %v826 = vpop.f32.mrb[0].mxu0
        %v827 = vadd.f32 0.0, %v826
        %v828 = vpop.f32.mrb[0].mxu0
        %829 = vmatprep.mubr.f32.mxu0 0.0
        %830 = vmatmul.mubr.f32.gmra.mrb[0].mxu0 %v745
        %v831 = vpop.f32.mrb[0].mxu0
        %v832 = vadd.f32 0.0, %v831
        %v833 = vpop.f32.mrb[0].mxu0
        %834 = vmatprep.mubr.f32.mxu0 0.0
        %835 = vmatmul.mubr.f32.gmra.mrb[0].mxu0 %v746
        %v836 = vpop.f32.mrb[0].mxu0
        %v837 = vadd.f32 0.0, %v836
        %v838 = vpop.f32.mrb[0].mxu0
        %839 = vmatprep.mubr.f32.mxu0 0.0
        %840 = vmatmul.mubr.f32.gmra.mrb[0].mxu0 %v747
        %v841 = vpop.f32.mrb[0].mxu0
        %v842 = vadd.f32 0.0, %v841
        %v843 = vpop.f32.mrb[0].mxu0
        %844 = vmatprep.mubr.f32.mxu0 0.0
        %845 = vmatmul.mubr.f32.gmra.mrb[0].mxu0 %v748
        %v846 = vpop.f32.mrb[0].mxu0
        %v847 = vadd.f32 0.0, %v846
        %v848 = vpop.f32.mrb[0].mxu0
        %849 = vmatprep.mubr.f32.mxu0 0.0
        %850 = vmatmul.mubr.f32.gmra.mrb[0].mxu0 %v749
        %v851 = vpop.f32.mrb[0].mxu0
        %v852 = vadd.f32 0.0, %v851
        %v853 = vpop.f32.mrb[0].mxu0
        %854 = vdwg.mxu0
        %v855 = vmax.f32 %v709, %v817
        %v856 = vmax.f32 %v710, %v822
        %v857 = vmax.f32 %v711, %v827
        %v858 = vmax.f32 %v712, %v832
        %v859 = vmax.f32 %v713, %v837
        %v860 = vmax.f32 %v714, %v842
        %v861 = vmax.f32 %v715, %v847
        %v862 = vmax.f32 %v716, %v852
        %863 = vst [vmem:[%s255] sm:$0xff] %v855
        %864 = vst [vmem:[%s255 + $0x8] sm:$0xff] %v856
        %865 = vst [vmem:[%s255 + $0x10] sm:$0xff] %v857
        %866 = vst [vmem:[%s255 + $0x18] sm:$0xff] %v858
        %867 = vst [vmem:[%s255 + $0x20] sm:$0xff] %v859
        %868 = vst [vmem:[%s255 + $0x28] sm:$0xff] %v860
        %869 = vst [vmem:[%s255 + $0x30] sm:$0xff] %v861
        %870 = vst [vmem:[%s255 + $0x38] sm:$0xff] %v862
        %s871 = sand.u32 %s119, 1
        %s872 = scalar_lea.sflag [#allocation4], %s871
        %s873 = sand.u32 %s119, 1
        %s874 = smul.addr %s873, 64
        %s875 = scalar_lea.vmem [#allocation7], %s874
        // Predicated region
        $region45: #{tpu_custom_call.1} parent=35 // pred_check
          %p876 = pneg %p129
        $region46: #{tpu_custom_call.1} parent=35 // pred_check_branch
          %878 = sbr.rel (%p876) target = $region48
        $region47: #{tpu_custom_call.1} parent=35 // pred_region
          %s879 = smul.u32 8, %s22
          %s881 = ssub.s32 1024, 1024
          %882 = vsyncadd %s872, %s881
          %s883 = smul.addr %s879, 128
          %s884 = scalar_lea.hbm %s4, %s883
          %s885 = sshll.u32 %s875, 4
          %s886 = int_to_ptr.vmem [resolvable:$true] %s885
          %891 = dma.vmem_to_hbm [thread:$0]  %s886, 1024, %s884, %s872, 128, 128, 8
        $region48: #{tpu_custom_call.1} parent=35 // pred_fallthru
          _
      $region36: #{tpu_custom_call.1} parent=5 // pred_fallthru
        _
      %p892 = scmp.le.s32.totalorder 2, %s17
      // Predicated region
      $region49: #{tpu_custom_call.1} parent=5 // pred_check
        %p893 = pneg %p892
      $region50: #{tpu_custom_call.1} parent=5 // pred_check_branch
        %895 = sbr.rel (%p893) target = $region52
      $region51: #{tpu_custom_call.1} parent=5 // pred_region
        %s896 = ssub.s32 %s17, 2
        // Predicated region
        $region53: #{tpu_custom_call.1} parent=51 // pred_check
          %p897 = pneg %p135
        $region54: #{tpu_custom_call.1} parent=51 // pred_check_branch
          %899 = sbr.rel (%p897) target = $region56
        $region55: #{tpu_custom_call.1} parent=51 // pred_region
          %s900 = sand.u32 %s120, 1
          %s901 = scalar_lea.sflag [#allocation4], %s900
          %s902 = sand.u32 %s120, 1
          %s903 = smul.addr %s902, 64
          %s904 = scalar_lea.vmem [#allocation7], %s903
          %905 = dma.done %s901, 1024
        $region56: #{tpu_custom_call.1} parent=51 // pred_fallthru
          _
      $region52: #{tpu_custom_call.1} parent=5 // pred_fallthru
        _
    $region6: #{tpu_custom_call.1} parent=1 // loop_footer
      %s21 = sadd.s32 1, %s17
    $region7: #{tpu_custom_call.1} parent=1 // loop_footer_branch
      %16 = sbr.rel target = $region3
    $region8: #{tpu_custom_call.1} parent=1 // loop_exit
      _
    %906 = vsyncpa [#allocation3], 1
    %s907 = scalar_lea.sflag [#allocation3], 1
    %908 = vsyncpa %s907, 1
    %909 = vsyncpa [#allocation6], 1
    %910 = vsyncpa [#allocation4], 1
    %s911 = scalar_lea.sflag [#allocation4], 1
    %912 = vsyncpa %s911, 1

</llo_original>
